<compile_context>
chip_gen: v7x
topology: tpu7x:2x2x1
jax: 0.10.0
libtpu: 0.0.40
codegen_flags: <defaults>
</compile_context>

<pallas_src>
import functools
import math

import jax
import jax.numpy as jnp
from jax import lax
from jax.experimental import pallas as pl
from jax.experimental.pallas import tpu as pltpu


# ---- synthetic cfg (HKO-7 evaluation constants), deterministic, in-script ----
BALANCING_WEIGHTS = (1.0, 1.0, 2.0, 5.0, 10.0, 30.0)
RAIN_THRESHOLDS = (0.5, 2.0, 5.0, 10.0, 30.0)  # mm/h


def rainfall_to_pixel(rainfall_intensity, a=58.53, b=1.56):
    # Standard HKO-7 rainfall -> pixel-value conversion (Z-R relationship).
    dBR = math.log10(rainfall_intensity) * 10.0
    dBZ = dBR * b + 10.0 * math.log10(a)
    return (dBZ + 10.0) / 70.0


PIXEL_THRESHOLDS = tuple(rainfall_to_pixel(t) for t in RAIN_THRESHOLDS)

# (threshold, weight-delta) pairs with non-zero delta (bw[1]-bw[0]==0 skipped).
_WEIGHT_STEPS = tuple(
    (float(PIXEL_THRESHOLDS[i]),
     float(BALANCING_WEIGHTS[i + 1] - BALANCING_WEIGHTS[i]))
    for i in range(len(PIXEL_THRESHOLDS))
    if BALANCING_WEIGHTS[i + 1] != BALANCING_WEIGHTS[i])

_LANE = 128
_MIB = 1024 * 1024
_RESERVE_BYTES = 8 * _MIB      # chunk temporaries + output blocks + Mosaic scratch
_CHUNK_ELEMS = 8192            # keep each streamed (tm, chunk) f32 temp ~8 vregs


def _cdiv(a, b):
    return -(-a // b)


def _round_up(x, m):
    return _cdiv(x, m) * m


# -------------------------- hardware-aware knobs -------------------------------
def _vmem_capacity_bytes():
    try:
        cap = getattr(pltpu.get_tpu_info(), "vmem_capacity_bytes", None)
        if cap:
            return int(cap)
    except Exception:
        pass
    return 64 * _MIB            # conservative (v7x-sized) fallback


def _num_tensorcores():
    # v7x / v5p / v4 expose 2 TensorCores behind one JAX device; the "parallel"
    # grid axis is what shards across them.  v5e / v6e are single-core.
    try:
        kind = jax.devices()[0].device_kind.lower().replace(" ", "")
    except Exception:
        return 1
    if "lite" in kind:
        return 1
    return 2 if any(m in kind for m in ("v7", "7x", "v5p", "v4")) else 1


def _fori(lo, hi, body, init, unroll):
    try:
        return lax.fori_loop(lo, hi, body, init, unroll=unroll)
    except TypeError:          # very old jax without unroll kwarg
        return lax.fori_loop(lo, hi, body, init)


# ------------------------------- Pallas kernel --------------------------------
def _wmse_mae_kernel(x_ref, t_ref, m_ref, mse_ref, mae_ref, *,
                     tn, chunk, n_valid, lane_blocks, mask_lanes, unroll):
    k = pl.program_id(1)
    tm = mse_ref.shape[0]
    groups = chunk // _LANE
    n_chunks = tn // chunk

    if mask_lanes:
        # hoisted once per tile; per chunk only a scalar add + compare remain
        base_col = lax.broadcasted_iota(jnp.int32, (tm, chunk), 1) + k * tn

    def chunk_body(c, carry):
        mse_acc, mae_acc = carry
        start = c * chunk
        if not isinstance(start, int):
            start = pl.multiple_of(start, chunk)
        # upcast per-chunk (inputs may arrive bf16 / int8 -> no wrapper copies,
        # and only (tm, chunk)-sized f32 temporaries are ever live)
        x = x_ref[:, pl.ds(start, chunk)].astype(jnp.float32)
        t = t_ref[:, pl.ds(start, chunk)].astype(jnp.float32)
        m = m_ref[:, pl.ds(start, chunk)].astype(jnp.float32)

        # balancing weights: w = bw[0] + sum_i delta_i * (t >= thr_i)
        # (cmp -> select -> add; no bool->f32 convert, no extra multiply)
        w = jnp.full(t.shape, BALANCING_WEIGHTS[0], jnp.float32)
        for thr, delta in _WEIGHT_STEPS:
            w = w + jnp.where(t >= thr, jnp.float32(delta), jnp.float32(0.0))

        a = jnp.abs(x - t)                       # |d|
        if mask_lanes:
            # ragged-lane tail: only m and |d| need masking (w is always finite)
            valid = (base_col + start) < n_valid
            m = jnp.where(valid, m, 0.0)
            a = jnp.where(valid, a, 0.0)
        w = w * m
        wa = w * a                               # weighted |d|
        wd2 = wa * a                             # weighted d^2 (reuses wa)

        # lane-dense (tm,128) partial sums: pure VALU adds, no XLU reduce and
        # no sub-128 masked stores in the hot loop
        mae_p = wa[:, 0:_LANE]
        mse_p = wd2[:, 0:_LANE]
        for g in range(1, groups):
            sl = slice(g * _LANE, (g + 1) * _LANE)
            mae_p = mae_p + wa[:, sl]
            mse_p = mse_p + wd2[:, sl]
        return (mse_acc + mse_p, mae_acc + mae_p)

    zeros = jnp.zeros((tm, _LANE), jnp.float32)
    if n_chunks == 1:
        mse_p, mae_p = chunk_body(0, (zeros, zeros))
    else:
        mse_p, mae_p = _fori(0, n_chunks, chunk_body, (zeros, zeros), unroll)

    if lane_blocks == 1:
        mse_ref[...] = mse_p
        mae_ref[...] = mae_p
    else:
        # output block index is constant along k -> resident accumulator
        @pl.when(k == 0)
        def _():
            mse_ref[...] = mse_p
            mae_ref[...] = mae_p

        @pl.when(k > 0)
        def _():
            mse_ref[...] = mse_ref[...] + mse_p
            mae_ref[...] = mae_ref[...] + mae_p


# ------------------------------- tiling choice ---------------------------------
def _choose_tiles(R, N, itemsizes, num_cores, vmem_limit):
    granule = max(8, max(32 // s for s in itemsizes))   # narrowest-dtype sublane granule
    in_bytes = sum(itemsizes)

    # rows (sublanes): small tiles keep streamed (tm, chunk) temporaries
    # ~vreg-sized; split across TensorCores only when the chip has two.
    r_pad = _round_up(max(R, 1), granule)
    tm = min(r_pad, max(granule, 32))
    if num_cores > 1 and r_pad >= num_cores * granule:
        tm = min(tm, _round_up(_cdiv(r_pad, num_cores), granule))

    # lanes: as big as the double-buffer budget allows; prefer a width that
    # divides N exactly so the ragged-lane mask is statically elided.
    n_pad = _round_up(max(N, 1), _LANE)
    budget = max(vmem_limit - _RESERVE_BYTES, 4 * _MIB)
    max_tn = max(_LANE, (budget // (2 * tm * in_bytes)) // _LANE * _LANE)
    if max_tn >= n_pad:
        tn = n_pad
    else:
        tn = max_tn
        if N % _LANE == 0:
            cand = max_tn
            while cand >= max(_LANE, max_tn // 2):
                if N % cand == 0:
                    tn = cand
                    break
                cand -= _LANE

    # chunk width for the streaming loop (multiple of 128, divides tn)
    chunk = max(_LANE, min(512, (_CHUNK_ELEMS // tm) // _LANE * _LANE))
    while tn % chunk:
        chunk //= 2
    return tm, tn, chunk


# --------------------------- weighted per-row sums ------------------------------
def _weighted_sums(x2d, t2d, m2d):
    """Per-row weighted sum_j w*(x-t)^2 and sum_j w*|x-t| via one pallas_call."""
    num_cores = _num_tensorcores()
    R, N = x2d.shape
    itemsizes = (x2d.dtype.itemsize, t2d.dtype.itemsize, m2d.dtype.itemsize)
    granule = max(8, max(32 // s for s in itemsizes))

    # Multi-core chips: if R alone cannot feed >= num_cores row blocks, fold
    # lanes into rows (free row-major reshape); un-fold in the epilogue.
    fold = 1
    if num_cores > 1:
        while (R * fold < num_cores * granule
               and N % (fold * 2) == 0
               and (N // (fold * 2)) % _LANE == 0):
            fold *= 2
    if fold > 1:
        R, N = R * fold, N // fold
        x2d = x2d.reshape(R, N)
        t2d = t2d.reshape(R, N)
        m2d = m2d.reshape(R, N)

    in_bytes = sum(itemsizes)
    phys = _vmem_capacity_bytes()
    vmem_limit = max(32 * _MIB, min(phys - 16 * _MIB, 64 * _MIB))
    tm, tn, chunk = _choose_tiles(R, N, itemsizes, num_cores, vmem_limit)
    row_blocks = _cdiv(R, tm)
    lane_blocks = _cdiv(N, tn)
    mask_lanes = (lane_blocks * tn) != N
    n_chunks = tn // chunk
    unroll = min(4, n_chunks)

    kernel = functools.partial(
        _wmse_mae_kernel, tn=tn, chunk=chunk, n_valid=N,
        lane_blocks=lane_blocks, mask_lanes=mask_lanes, unroll=unroll)

    in_spec = pl.BlockSpec((tm, tn), lambda i, k: (i, k))
    out_spec = pl.BlockSpec((tm, _LANE), lambda i, k: (i, 0))

    cost = pl.CostEstimate(
        flops=20 * R * N,
        transcendentals=0,
        bytes_accessed=R * N * in_bytes + 2 * R * _LANE * 4,
    )

    mse_p, mae_p = pl.pallas_call(
        kernel,
        out_shape=(
            jax.ShapeDtypeStruct((R, _LANE), jnp.float32),
            jax.ShapeDtypeStruct((R, _LANE), jnp.float32),
        ),
        grid_spec=pltpu.PrefetchScalarGridSpec(
            num_scalar_prefetch=0,
            grid=(row_blocks, lane_blocks),
            in_specs=[in_spec, in_spec, in_spec],
            out_specs=[out_spec, out_spec],
        ),
        compiler_params=pltpu.CompilerParams(
            dimension_semantics=("parallel", "arbitrary"),
            vmem_limit_bytes=vmem_limit,
        ),
        cost_estimate=cost,
    )(x2d, t2d, m2d)

    # tiny epilogue: finish the 128-lane reduce (and un-fold) outside the kernel
    mse_rows = jnp.sum(mse_p, axis=1)
    mae_rows = jnp.sum(mae_p, axis=1)
    if fold > 1:
        mse_rows = jnp.sum(mse_rows.reshape(-1, fold), axis=1)
        mae_rows = jnp.sum(mae_rows.reshape(-1, fold), axis=1)
    return mse_rows, mae_rows


# ------------------------------- module wrapper --------------------------------
@functools.partial(jax.jit, static_argnames=(
    "mse_weight", "mae_weight", "normal_loss_global_scale", "lam"))
def weighted_mse_mae(inp, target, mask, *,
                     mse_weight=1.0, mae_weight=1.0,
                     normal_loss_global_scale=5e-05, lam=None):
    # inp/target/mask: (S, B, C, H, W); dtypes may differ (cast happens in-kernel)
    S, B, C, H, W = inp.shape
    R = S * B
    N = C * H * W
    # reshape only — no wrapper-side dtype casts or padding passes over HBM
    mse_rows, mae_rows = _weighted_sums(
        inp.reshape(R, N), target.reshape(R, N), mask.reshape(R, N))
    mse = mse_rows.reshape(S, B)   # matches torch.sum(..., (2,3,4)) -> (S, B)
    mae = mae_rows.reshape(S, B)

    if lam is not None:
        w = 1.0 + lam * jnp.arange(S, dtype=jnp.float32)   # arange(1, 1+S*lam, lam)
        mse = mse * w[:, None]
        mae = mae * w[:, None]

    return normal_loss_global_scale * (
        mse_weight * jnp.mean(mse) + mae_weight * jnp.mean(mae))


# ------------------------------------ main ------------------------------------
if __name__ == "__main__":
    key = jax.random.PRNGKey(0)
    k1, k2, k3 = jax.random.split(key, 3)

    S, B, C, H, W = 8, 2, 1, 16, 16
    inp = jax.random.uniform(k1, (S, B, C, H, W), dtype=jnp.float32)
    target = jax.random.uniform(k2, (S, B, C, H, W), dtype=jnp.float32)
    # mask fed at a narrow dtype (bf16 0/1): kernel upcasts per-chunk (less HBM traffic)
    mask = (jax.random.uniform(k3, (S, B, C, H, W)) > 0.2).astype(jnp.bfloat16)

    loss = weighted_mse_mae(inp, target, mask)
    jax.block_until_ready(loss)

    # pure-JAX f32 reference (same math, no Pallas)
    mask_f = mask.astype(jnp.float32)
    w_ref = jnp.full(inp.shape, BALANCING_WEIGHTS[0], jnp.float32)
    for i, thr in enumerate(PIXEL_THRESHOLDS):
        w_ref = w_ref + (BALANCING_WEIGHTS[i + 1] - BALANCING_WEIGHTS[i]) * (
            target >= thr).astype(jnp.float32)
    w_ref = w_ref * mask_f
    mse_ref = jnp.sum(w_ref * (inp - target) ** 2, axis=(2, 3, 4))
    mae_ref = jnp.sum(w_ref * jnp.abs(inp - target), axis=(2, 3, 4))
    loss_ref = 5e-05 * (jnp.mean(mse_ref) + jnp.mean(mae_ref))

    assert jnp.allclose(loss, loss_ref, rtol=1e-5, atol=1e-7), (loss, loss_ref)
    print("KERNEL_OK")
</pallas_src>

<mosaic_0001>
module attributes {stable_mosaic.version = 11 : i64} {
  func.func @_wmse_mae_kernel(%arg0: i32, %arg1: i32, %arg2: memref<16x256xf32, #tpu.memory_space<vmem>>, %arg3: memref<16x256xf32, #tpu.memory_space<vmem>>, %arg4: memref<16x256xbf16, #tpu.memory_space<vmem>>, %arg5: memref<16x128xf32, #tpu.memory_space<vmem>>, %arg6: memref<16x128xf32, #tpu.memory_space<vmem>>) attributes {dimension_semantics = [#tpu.dimension_semantics<parallel>, #tpu.dimension_semantics<arbitrary>], iteration_bounds = array<i64: 1, 1>, scalar_prefetch = 0 : i64, scratch_operands = 0 : i64, tpu.core_type = #tpu.core_type<tc>, window_params = [{transform_indices = @transform_0, window_bounds = array<i64: 16, 256>}, {transform_indices = @transform_1, window_bounds = array<i64: 16, 256>}, {transform_indices = @transform_2, window_bounds = array<i64: 16, 256>}, {transform_indices = @transform_3, window_bounds = array<i64: 16, 128>}, {transform_indices = @transform_4, window_bounds = array<i64: 16, 128>}]} {
    %cst = arith.constant 0.000000e+00 : f32
    %0 = vector.broadcast %cst : f32 to vector<16x128xf32>
    %c0 = arith.constant 0 : index
    %c0_0 = arith.constant 0 : index
    %1 = vector.load %arg2[%c0, %c0_0] : memref<16x256xf32, #tpu.memory_space<vmem>>, vector<16x256xf32>
    %c0_1 = arith.constant 0 : index
    %c0_2 = arith.constant 0 : index
    %2 = vector.load %arg3[%c0_1, %c0_2] : memref<16x256xf32, #tpu.memory_space<vmem>>, vector<16x256xf32>
    %c0_3 = arith.constant 0 : index
    %c0_4 = arith.constant 0 : index
    %3 = vector.load %arg4[%c0_3, %c0_4] : memref<16x256xbf16, #tpu.memory_space<vmem>>, vector<16x256xbf16>
    %4 = arith.extf %3 : vector<16x256xbf16> to vector<16x256xf32>
    %cst_5 = arith.constant 1.000000e+00 : f32
    %5 = vector.broadcast %cst_5 : f32 to vector<16x256xf32>
    %cst_6 = arith.constant 0.462426484 : f32
    %6 = vector.broadcast %cst_6 : f32 to vector<16x256xf32>
    %7 = arith.cmpf oge, %2, %6 : vector<16x256xf32>
    %cst_7 = arith.constant 1.000000e+00 : f32
    %cst_8 = arith.constant 0.000000e+00 : f32
    %8 = vector.broadcast %cst_7 : f32 to vector<16x256xf32>
    %9 = vector.broadcast %cst_8 : f32 to vector<16x256xf32>
    %10 = arith.select %7, %8, %9 : vector<16x256xi1>, vector<16x256xf32>
    %11 = arith.addf %5, %10 : vector<16x256xf32>
    %cst_9 = arith.constant 0.551110268 : f32
    %12 = vector.broadcast %cst_9 : f32 to vector<16x256xf32>
    %13 = arith.cmpf oge, %2, %12 : vector<16x256xf32>
    %cst_10 = arith.constant 3.000000e+00 : f32
    %cst_11 = arith.constant 0.000000e+00 : f32
    %14 = vector.broadcast %cst_10 : f32 to vector<16x256xf32>
    %15 = vector.broadcast %cst_11 : f32 to vector<16x256xf32>
    %16 = arith.select %13, %14, %15 : vector<16x256xi1>, vector<16x256xf32>
    %17 = arith.addf %11, %16 : vector<16x256xf32>
    %cst_12 = arith.constant 0.618196904 : f32
    %18 = vector.broadcast %cst_12 : f32 to vector<16x256xf32>
    %19 = arith.cmpf oge, %2, %18 : vector<16x256xf32>
    %cst_13 = arith.constant 5.000000e+00 : f32
    %cst_14 = arith.constant 0.000000e+00 : f32
    %20 = vector.broadcast %cst_13 : f32 to vector<16x256xf32>
    %21 = vector.broadcast %cst_14 : f32 to vector<16x256xf32>
    %22 = arith.select %19, %20, %21 : vector<16x256xi1>, vector<16x256xf32>
    %23 = arith.addf %17, %22 : vector<16x256xf32>
    %cst_15 = arith.constant 0.724526822 : f32
    %24 = vector.broadcast %cst_15 : f32 to vector<16x256xf32>
    %25 = arith.cmpf oge, %2, %24 : vector<16x256xf32>
    %cst_16 = arith.constant 2.000000e+01 : f32
    %cst_17 = arith.constant 0.000000e+00 : f32
    %26 = vector.broadcast %cst_16 : f32 to vector<16x256xf32>
    %27 = vector.broadcast %cst_17 : f32 to vector<16x256xf32>
    %28 = arith.select %25, %26, %27 : vector<16x256xi1>, vector<16x256xf32>
    %29 = arith.addf %23, %28 : vector<16x256xf32>
    %30 = arith.subf %1, %2 : vector<16x256xf32>
    %31 = math.absf %30 : vector<16x256xf32>
    %32 = arith.mulf %29, %4 : vector<16x256xf32>
    %33 = arith.mulf %32, %31 : vector<16x256xf32>
    %34 = arith.mulf %33, %31 : vector<16x256xf32>
    %35 = vector.extract_strided_slice %33 {offsets = [0, 0], sizes = [16, 128], strides = [1, 1]} : vector<16x256xf32> to vector<16x128xf32>
    %36 = vector.extract_strided_slice %34 {offsets = [0, 0], sizes = [16, 128], strides = [1, 1]} : vector<16x256xf32> to vector<16x128xf32>
    %37 = vector.extract_strided_slice %33 {offsets = [0, 128], sizes = [16, 128], strides = [1, 1]} : vector<16x256xf32> to vector<16x128xf32>
    %38 = arith.addf %35, %37 : vector<16x128xf32>
    %39 = vector.extract_strided_slice %34 {offsets = [0, 128], sizes = [16, 128], strides = [1, 1]} : vector<16x256xf32> to vector<16x128xf32>
    %40 = arith.addf %36, %39 : vector<16x128xf32>
    %41 = arith.addf %0, %40 : vector<16x128xf32>
    %42 = arith.addf %0, %38 : vector<16x128xf32>
    %c0_18 = arith.constant 0 : index
    %c0_19 = arith.constant 0 : index
    %43 = vector.load %arg5[%c0_18, %c0_19] : memref<16x128xf32, #tpu.memory_space<vmem>>, vector<16x128xf32>
    tpu.vector_store %arg5[%c0_18, %c0_19], %41 {strides = array<i32>} : memref<16x128xf32, #tpu.memory_space<vmem>>, vector<16x128xf32>,
    %c0_20 = arith.constant 0 : index
    %c0_21 = arith.constant 0 : index
    %44 = vector.load %arg6[%c0_20, %c0_21] : memref<16x128xf32, #tpu.memory_space<vmem>>, vector<16x128xf32>
    tpu.vector_store %arg6[%c0_20, %c0_21], %42 {strides = array<i32>} : memref<16x128xf32, #tpu.memory_space<vmem>>, vector<16x128xf32>,
    return
  }
  func.func @transform_0(%arg0: i32, %arg1: i32) -> (i32, i32) {
    %c0_i32 = arith.constant 0 : i32
    return %arg0, %arg1 : i32, i32
  }
  func.func @transform_1(%arg0: i32, %arg1: i32) -> (i32, i32) {
    %c0_i32 = arith.constant 0 : i32
    return %arg0, %arg1 : i32, i32
  }
  func.func @transform_2(%arg0: i32, %arg1: i32) -> (i32, i32) {
    %c0_i32 = arith.constant 0 : i32
    return %arg0, %arg1 : i32, i32
  }
  func.func @transform_3(%arg0: i32, %arg1: i32) -> (i32, i32) {
    %c0_i32 = arith.constant 0 : i32
    %c0_i32_0 = arith.constant 0 : i32
    return %arg0, %c0_i32 : i32, i32
  }
  func.func @transform_4(%arg0: i32, %arg1: i32) -> (i32, i32) {
    %c0_i32 = arith.constant 0 : i32
    %c0_i32_0 = arith.constant 0 : i32
    return %arg0, %c0_i32 : i32, i32
  }
}

</mosaic_0001>

<llo_original>
// kernel: weighted_mse_mae.1
$region0: #{weighted_mse_mae.1}
  #allocation0 [shape = 'u32[]', space=smem, size = 0x4, offset = 0x4, fixed_abs, tag = 'smem constant byte address 0x4 - core index']
  #allocation1 [shape = 'u32[144,128]{1,0:T(1,128)}', space=vmem, size = 0x12000, scoped, tag = 'internal scratch']
  %s0 = inlined_call_operand.vmem [shape: f32[16,256], index: 0, kind: input, shape index: {}]
  %s1 = inlined_call_operand.vmem [shape: f32[16,256], index: 1, kind: input, shape index: {}]
  %s2 = inlined_call_operand.vmem [shape: bf16[16,256], index: 2, kind: input, shape index: {}]
  %s3 = inlined_call_operand.vmem [shape: f32[16,128], index: 3, kind: output, shape index: {0}]
  %s4 = inlined_call_operand.vmem [shape: f32[16,128], index: 4, kind: output, shape index: {1}]
  %5 = xla_tuple %s3, %s4
  %s6 = sld [smem:[#allocation0]]
  $region30: #{weighted_mse_mae.1} parent=0
    _
  %s8 = ssub.s32 1, %s6
  %s9 = scalar_select 0, %s8, %s6
  // Predicated region
  $region2: #{weighted_mse_mae.1} parent=0 // pred_check
    _
  $region3: #{weighted_mse_mae.1} parent=0 // pred_check_branch
    %11 = sbr.rel (0) target = $region5
  $region4: #{weighted_mse_mae.1} parent=0 // pred_region
    _
  $region5: #{weighted_mse_mae.1} parent=0 // pred_fallthru
    _
  // Predicated region
  $region6: #{weighted_mse_mae.1} parent=0 // pred_check
    _
  $region7: #{weighted_mse_mae.1} parent=0 // pred_check_branch
    %13 = sbr.rel (0) target = $region9
  $region8: #{weighted_mse_mae.1} parent=0 // pred_region
    _
  $region9: #{weighted_mse_mae.1} parent=0 // pred_fallthru
    _
  // Predicated region
  $region10: #{weighted_mse_mae.1} parent=0 // pred_check
    _
  $region11: #{weighted_mse_mae.1} parent=0 // pred_check_branch
    %15 = sbr.rel (0) target = $region13
  $region12: #{weighted_mse_mae.1} parent=0 // pred_region
    _
  $region13: #{weighted_mse_mae.1} parent=0 // pred_fallthru
    _
  %v16 = vld [vmem:[%s0] sm:$0xff]
  %v17 = vld [vmem:[%s0 + $0x8] sm:$0xff]
  %v18 = vld [vmem:[%s0 + $0x10] sm:$0xff]
  %v19 = vld [vmem:[%s0 + $0x18] sm:$0xff]
  %v20 = vld [vmem:[%s1] sm:$0xff]
  %v21 = vld [vmem:[%s1 + $0x8] sm:$0xff]
  %v22 = vld [vmem:[%s1 + $0x10] sm:$0xff]
  %v23 = vld [vmem:[%s1 + $0x18] sm:$0xff]
  %v24 = vld [vmem:[%s2] sm:$0xff]
  %v25 = vld [vmem:[%s2 + $0x8] sm:$0xff]
  %v26 = vunpack.c.l.bf16 %v24
  %v27 = vunpack.c.h.bf16 %v24
  %v28 = vunpack.c.l.bf16 %v25
  %v29 = vunpack.c.h.bf16 %v25
  %vm30 = vcmp.ge.f32.partialorder %v20, 0.46242648
  %vm31 = vcmp.ge.f32.partialorder %v21, 0.46242648
  %vm32 = vcmp.ge.f32.partialorder %v22, 0.46242648
  %vm33 = vcmp.ge.f32.partialorder %v23, 0.46242648
  %v34 = vsel %vm30, 1.0, 0.0
  %v35 = vsel %vm31, 1.0, 0.0
  %v36 = vsel %vm32, 1.0, 0.0
  %v37 = vsel %vm33, 1.0, 0.0
  %v38 = vadd.f32 %v34, 1.0
  %v39 = vadd.f32 %v35, 1.0
  %v40 = vadd.f32 %v36, 1.0
  %v41 = vadd.f32 %v37, 1.0
  %vm42 = vcmp.ge.f32.partialorder %v20, 0.55111027
  %vm43 = vcmp.ge.f32.partialorder %v21, 0.55111027
  %vm44 = vcmp.ge.f32.partialorder %v22, 0.55111027
  %vm45 = vcmp.ge.f32.partialorder %v23, 0.55111027
  %v46 = vsel %vm42, 3.0, 0.0
  %v47 = vsel %vm43, 3.0, 0.0
  %v48 = vsel %vm44, 3.0, 0.0
  %v49 = vsel %vm45, 3.0, 0.0
  %v50 = vadd.f32 %v38, %v46
  %v51 = vadd.f32 %v39, %v47
  %v52 = vadd.f32 %v40, %v48
  %v53 = vadd.f32 %v41, %v49
  %vm54 = vcmp.ge.f32.partialorder %v20, 0.6181969
  %vm55 = vcmp.ge.f32.partialorder %v21, 0.6181969
  %vm56 = vcmp.ge.f32.partialorder %v22, 0.6181969
  %vm57 = vcmp.ge.f32.partialorder %v23, 0.6181969
  %v58 = vsel %vm54, 5.0, 0.0
  %v59 = vsel %vm55, 5.0, 0.0
  %v60 = vsel %vm56, 5.0, 0.0
  %v61 = vsel %vm57, 5.0, 0.0
  %v62 = vadd.f32 %v50, %v58
  %v63 = vadd.f32 %v51, %v59
  %v64 = vadd.f32 %v52, %v60
  %v65 = vadd.f32 %v53, %v61
  %vm66 = vcmp.ge.f32.partialorder %v20, 0.7245268
  %vm67 = vcmp.ge.f32.partialorder %v21, 0.7245268
  %vm68 = vcmp.ge.f32.partialorder %v22, 0.7245268
  %vm69 = vcmp.ge.f32.partialorder %v23, 0.7245268
  %v70 = vsel %vm66, 20.0, 0.0
  %v71 = vsel %vm67, 20.0, 0.0
  %v72 = vsel %vm68, 20.0, 0.0
  %v73 = vsel %vm69, 20.0, 0.0
  %v74 = vadd.f32 %v62, %v70
  %v75 = vadd.f32 %v63, %v71
  %v76 = vadd.f32 %v64, %v72
  %v77 = vadd.f32 %v65, %v73
  %v78 = vsub.f32 %v16, %v20
  %v79 = vsub.f32 %v17, %v21
  %v80 = vsub.f32 %v18, %v22
  %v81 = vsub.f32 %v19, %v23
  %v82 = vand.u32 2147483647, %v78
  %v83 = vand.u32 2147483647, %v79
  %v84 = vand.u32 2147483647, %v80
  %v85 = vand.u32 2147483647, %v81
  %v86 = vmul.f32 %v74, %v26
  %v87 = vmul.f32 %v75, %v27
  %v88 = vmul.f32 %v76, %v28
  %v89 = vmul.f32 %v77, %v29
  %v90 = vmul.f32 %v86, %v82
  %v91 = vmul.f32 %v87, %v83
  %v92 = vmul.f32 %v88, %v84
  %v93 = vmul.f32 %v89, %v85
  %v94 = vmul.f32 %v90, %v82
  %v95 = vmul.f32 %v91, %v83
  %v96 = vmul.f32 %v92, %v84
  %v97 = vmul.f32 %v93, %v85
  %v98 = vadd.f32 %v90, %v91
  %v99 = vadd.f32 %v92, %v93
  %v100 = vadd.f32 %v94, %v95
  %v101 = vadd.f32 %v96, %v97
  %v102 = vadd.f32 %v100, 0.0
  %v103 = vadd.f32 %v101, 0.0
  %v104 = vadd.f32 %v98, 0.0
  %v105 = vadd.f32 %v99, 0.0
  %106 = vst [vmem:[%s3] sm:$0xff] %v102
  %107 = vst [vmem:[%s3 + $0x8] sm:$0xff] %v103
  %108 = vst [vmem:[%s4] sm:$0xff] %v104
  %109 = vst [vmem:[%s4 + $0x8] sm:$0xff] %v105
  // Predicated region
  $region14: #{weighted_mse_mae.1} parent=0 // pred_check
    _
  $region15: #{weighted_mse_mae.1} parent=0 // pred_check_branch
    %111 = sbr.rel (0) target = $region17
  $region16: #{weighted_mse_mae.1} parent=0 // pred_region
    _
  $region17: #{weighted_mse_mae.1} parent=0 // pred_fallthru
    _
  // Predicated region
  $region18: #{weighted_mse_mae.1} parent=0 // pred_check
    _
  $region19: #{weighted_mse_mae.1} parent=0 // pred_check_branch
    %113 = sbr.rel (0) target = $region21
  $region20: #{weighted_mse_mae.1} parent=0 // pred_region
    _
  $region21: #{weighted_mse_mae.1} parent=0 // pred_fallthru
    _
  // Predicated region
  $region22: #{weighted_mse_mae.1} parent=0 // pred_check
    _
  $region23: #{weighted_mse_mae.1} parent=0 // pred_check_branch
    %115 = sbr.rel (0) target = $region25
  $region24: #{weighted_mse_mae.1} parent=0 // pred_region
    _
  $region25: #{weighted_mse_mae.1} parent=0 // pred_fallthru
    _
  // Predicated region
  $region26: #{weighted_mse_mae.1} parent=0 // pred_check
    _
  $region27: #{weighted_mse_mae.1} parent=0 // pred_check_branch
    %117 = sbr.rel (0) target = $region29
  $region28: #{weighted_mse_mae.1} parent=0 // pred_region
    _
  $region29: #{weighted_mse_mae.1} parent=0 // pred_fallthru
    _

</llo_original>
